<compile_context>
chip_gen: v5e
topology: v5e:2x2
jax: 0.10.0
libtpu: 0.0.40
codegen_flags: <defaults>
</compile_context>

<pallas_src>
import functools

import jax
import jax.numpy as jnp
from jax.experimental import pallas as pl
from jax.experimental.pallas import tpu as pltpu


def _round_up(x, m):
    return ((x + m - 1) // m) * m


def _largest_divisor_leq(n, cap):
    for d in range(min(n, cap), 0, -1):
        if n % d == 0:
            return d
    return 1


# ----------------------------- Pallas kernel ------------------------------ #
def lstm_kernel(gx_ref, whh_ref, wout_ref, bout_ref, out_ref,
                h_scr, c_scr, m_scr):
    """Recurrent part of the fused model.

    gx_ref  : [T_BLK, Bp, 4*Hp]  precomputed X @ W_ih + b  (streamed over time grid)
    whh_ref : [Hp, 4*Hp]         recurrent weights (resident, constant block index)
    wout_ref: [Hp, Cp]           output head weights (resident)
    bout_ref: [1, Cp]            output head bias
    out_ref : [Bp, Cp]           logits (written on the last grid step only)
    h_scr/c_scr/m_scr : [Bp, Hp] VMEM scratch persisting across grid steps
    """
    t_blk_idx = pl.program_id(0)
    Hp = h_scr.shape[1]
    T_BLK = gx_ref.shape[0]

    @pl.when(t_blk_idx == 0)
    def _init():
        h_scr[...] = jnp.zeros_like(h_scr)
        c_scr[...] = jnp.zeros_like(c_scr)
        m_scr[...] = jnp.full(m_scr.shape, -jnp.inf, m_scr.dtype)

    # Hoisted: load recurrent weights once per grid step (not once per timestep).
    whh = whh_ref[...]

    def step(t, carry):
        h = h_scr[...]
        c = c_scr[...]
        # Bias already folded into gx; only the recurrent matmul is on the
        # critical path.
        gates = gx_ref[t] + jnp.dot(h, whh, preferred_element_type=jnp.float32)
        # Hp is a multiple of 128 -> each gate slice is lane-aligned (full vregs).
        i = jax.nn.sigmoid(gates[:, 0 * Hp:1 * Hp])
        f = jax.nn.sigmoid(gates[:, 1 * Hp:2 * Hp])
        g = jnp.tanh(gates[:, 2 * Hp:3 * Hp])
        o = jax.nn.sigmoid(gates[:, 3 * Hp:4 * Hp])
        c_new = f * c + i * g
        h_new = o * jnp.tanh(c_new)
        h_scr[...] = h_new
        c_scr[...] = c_new
        m_scr[...] = jnp.maximum(m_scr[...], h_new)  # torch.max(lstm_out, dim=1)[0]
        return carry

    # Short dependent chain per step -> unroll for scheduler visibility.
    if T_BLK <= 16:
        unroll = T_BLK
    elif T_BLK % 4 == 0:
        unroll = 4
    else:
        unroll = 1
    jax.lax.fori_loop(0, T_BLK, step, 0, unroll=unroll)

    @pl.when(t_blk_idx == pl.num_programs(0) - 1)
    def _finalize():
        out_ref[...] = (jnp.dot(m_scr[...], wout_ref[...],
                                preferred_element_type=jnp.float32)
                        + bout_ref[...])


# ------------------------------- wrapper ----------------------------------- #
@functools.partial(jax.jit, static_argnames=("max_t_blk",))
def seq2seq_forward(input_seq, emb_table, w_ih, w_hh, b_ih, b_hh, w_out, b_out,
                    *, max_t_blk=64):
    """input_seq: [B, T] int32 token ids.  PyTorch-layout weights:
       w_ih [4H, E], w_hh [4H, H], b_ih/b_hh [4H], w_out [C, H], b_out [C].
       Returns logits [B, C] (f32)."""
    B, T = input_seq.shape
    E = emb_table.shape[1]
    H = w_hh.shape[1]
    C = w_out.shape[0]

    Bp = _round_up(B, 8)        # sublane multiple
    Hp = _round_up(H, 128)      # lane multiple -> lane-aligned gate slices
    Cp = _round_up(C, 128)      # lane-dense output store

    # ---- parameter repacking / padding (tiny; done once per call under jit) ----
    def pad_gate_cols(w_t):     # [K, 4H] -> [K, 4*Hp], per-gate lane padding
        K = w_t.shape[0]
        w4 = w_t.reshape(K, 4, H)
        w4 = jnp.pad(w4, ((0, 0), (0, 0), (0, Hp - H)))
        return w4.reshape(K, 4 * Hp)

    wih_p = pad_gate_cols(w_ih.T.astype(jnp.float32))                 # [E, 4*Hp]
    whh_p = jnp.pad(pad_gate_cols(w_hh.T.astype(jnp.float32)),
                    ((0, Hp - H), (0, 0)))                            # [Hp, 4*Hp]
    bias_p = jnp.pad((b_ih + b_hh).astype(jnp.float32).reshape(4, H),
                     ((0, 0), (0, Hp - H))).reshape(1, 4 * Hp)        # [1, 4*Hp]
    wout_p = jnp.pad(w_out.T.astype(jnp.float32),
                     ((0, Hp - H), (0, Cp - C)))                      # [Hp, Cp]
    bout_p = jnp.pad(b_out.astype(jnp.float32),
                     (0, Cp - C)).reshape(1, Cp)                      # [1, Cp]

    # ---- embedding gather directly in time-major order (no [B,T,E] transpose) ----
    emb_tm = jnp.take(emb_table.astype(jnp.float32), input_seq.T, axis=0)  # [T, B, E]
    emb_tm = jnp.pad(emb_tm, ((0, 0), (0, Bp - B), (0, 0)))                # [T, Bp, E]

    # ---- hoisted input projection: one big GEMM, bias folded in ----
    gx = (emb_tm.reshape(T * Bp, E) @ wih_p + bias_p).reshape(T, Bp, 4 * Hp)

    # ---- time block: keep the streamed (double-buffered) slab small ----
    bytes_per_step = Bp * 4 * Hp * 4
    budget_steps = max(1, (4 * 1024 * 1024) // bytes_per_step)   # <=4 MiB per buffer
    t_blk = _largest_divisor_leq(T, max(1, min(max_t_blk, budget_steps, T)))
    grid = (T // t_blk,)

    out = pl.pallas_call(
        lstm_kernel,
        out_shape=jax.ShapeDtypeStruct((Bp, Cp), jnp.float32),
        grid_spec=pltpu.PrefetchScalarGridSpec(
            num_scalar_prefetch=0,
            grid=grid,
            in_specs=[
                # streamed gate slab: double-buffered prefetch along time
                pl.BlockSpec((t_blk, Bp, 4 * Hp), lambda t: (t, 0, 0)),
                # weights / head params: constant block index -> resident in VMEM
                pl.BlockSpec((Hp, 4 * Hp), lambda t: (0, 0)),
                pl.BlockSpec((Hp, Cp), lambda t: (0, 0)),
                pl.BlockSpec((1, Cp), lambda t: (0, 0)),
            ],
            out_specs=pl.BlockSpec((Bp, Cp), lambda t: (0, 0)),
            scratch_shapes=[
                pltpu.VMEM((Bp, Hp), jnp.float32),   # h
                pltpu.VMEM((Bp, Hp), jnp.float32),   # c
                pltpu.VMEM((Bp, Hp), jnp.float32),   # running max over time
            ],
        ),
        compiler_params=pltpu.CompilerParams(
            dimension_semantics=("arbitrary",),      # sequential recurrence
            vmem_limit_bytes=64 * 1024 * 1024,
        ),
    )(gx, whh_p, wout_p, bout_p)

    return out[:B, :C]


# ------------------------- pure-JAX reference ------------------------------ #
def seq2seq_reference(input_seq, emb_table, w_ih, w_hh, b_ih, b_hh, w_out, b_out):
    B, T = input_seq.shape
    H = w_hh.shape[1]
    wih_t = w_ih.T
    whh_t = w_hh.T
    bias = b_ih + b_hh
    embedded = jnp.take(emb_table, input_seq, axis=0)          # [B, T, E]
    h = jnp.zeros((B, H), jnp.float32)
    c = jnp.zeros((B, H), jnp.float32)
    hs = []
    for t in range(T):
        gates = embedded[:, t, :] @ wih_t + h @ whh_t + bias
        i = jax.nn.sigmoid(gates[:, 0 * H:1 * H])
        f = jax.nn.sigmoid(gates[:, 1 * H:2 * H])
        g = jnp.tanh(gates[:, 2 * H:3 * H])
        o = jax.nn.sigmoid(gates[:, 3 * H:4 * H])
        c = f * c + i * g
        h = o * jnp.tanh(c)
        hs.append(h)
    max_pooled = jnp.max(jnp.stack(hs, axis=1), axis=1)
    return max_pooled @ w_out.T + b_out


# --------------------------------- main ------------------------------------ #
if __name__ == "__main__":
    # Small shapes consistent with the module (emb_size == hidden_size,
    # num_classes = 2), scaled down from 300 -> 32 for a quick test.
    VOCAB = 64
    EMB = 32
    HIDDEN = 32
    NUM_CLASSES = 2
    BATCH = 2
    SEQ = 8

    key = jax.random.PRNGKey(0)
    ks = jax.random.split(key, 8)

    emb_table = jax.random.normal(ks[0], (VOCAB, EMB), jnp.float32) * 0.1
    w_ih = jax.random.normal(ks[1], (4 * HIDDEN, EMB), jnp.float32) * 0.1     # nn.LSTM weight_ih_l0
    w_hh = jax.random.normal(ks[2], (4 * HIDDEN, HIDDEN), jnp.float32) * 0.1  # weight_hh_l0
    b_ih = jax.random.normal(ks[3], (4 * HIDDEN,), jnp.float32) * 0.1
    b_hh = jax.random.normal(ks[4], (4 * HIDDEN,), jnp.float32) * 0.1
    w_out = jax.random.normal(ks[5], (NUM_CLASSES, HIDDEN), jnp.float32) * 0.1  # nn.Linear weight
    b_out = jax.random.normal(ks[6], (NUM_CLASSES,), jnp.float32) * 0.1

    input_seq = jax.random.randint(ks[7], (BATCH, SEQ), 0, VOCAB, jnp.int32)

    # max_t_blk=4 -> grid=(2,) on SEQ=8 so the pipelined time grid (init /
    # carry / finalize path) is actually exercised in this small test.
    out = seq2seq_forward(input_seq, emb_table, w_ih, w_hh, b_ih, b_hh,
                          w_out, b_out, max_t_blk=4)
    out = jax.block_until_ready(out)

    ref = seq2seq_reference(input_seq, emb_table, w_ih, w_hh, b_ih, b_hh,
                            w_out, b_out)
    assert out.shape == (BATCH, NUM_CLASSES)
    assert jnp.allclose(out, ref, atol=1e-4, rtol=1e-3), (out, ref)

    print("KERNEL_OK")
</pallas_src>

<mosaic_0001>
module attributes {stable_mosaic.version = 11 : i64} {
  func.func @lstm_kernel(%arg0: i32, %arg1: memref<4x8x512xf32, #tpu.memory_space<vmem>>, %arg2: memref<128x512xf32, #tpu.memory_space<vmem>>, %arg3: memref<128x128xf32, #tpu.memory_space<vmem>>, %arg4: memref<1x128xf32, #tpu.memory_space<vmem>>, %arg5: memref<8x128xf32, #tpu.memory_space<vmem>>, %arg6: memref<8x128xf32, #tpu.memory_space<vmem>>, %arg7: memref<8x128xf32, #tpu.memory_space<vmem>>, %arg8: memref<8x128xf32, #tpu.memory_space<vmem>>) attributes {dimension_semantics = [#tpu.dimension_semantics<arbitrary>], iteration_bounds = array<i64: 2>, scalar_prefetch = 0 : i64, scratch_operands = 3 : i64, tpu.core_type = #tpu.core_type<tc>, window_params = [{transform_indices = @transform_0, window_bounds = array<i64: 4, 8, 512>}, {pipeline_mode = #tpu.pipeline_mode<synchronous>, transform_indices = @transform_1, window_bounds = array<i64: 128, 512>}, {pipeline_mode = #tpu.pipeline_mode<synchronous>, transform_indices = @transform_2, window_bounds = array<i64: 128, 128>}, {pipeline_mode = #tpu.pipeline_mode<synchronous>, transform_indices = @transform_3, window_bounds = array<i64: 1, 128>}, {pipeline_mode = #tpu.pipeline_mode<synchronous>, transform_indices = @transform_4, window_bounds = array<i64: 8, 128>}]} {
    %c0_i32 = arith.constant 0 : i32
    %0 = arith.cmpi eq, %arg0, %c0_i32 : i32
    %1 = arith.extui %0 : i1 to i32
    %c0_i32_0 = arith.constant 0 : i32
    %2 = arith.cmpi ne, %1, %c0_i32_0 : i32
    scf.if %2 {
      %cst_76 = arith.constant 0.000000e+00 : f32
      %155 = vector.broadcast %cst_76 : f32 to vector<8x128xf32>
      %c0_77 = arith.constant 0 : index
      %c0_78 = arith.constant 0 : index
      %156 = vector.load %arg6[%c0_77, %c0_78] : memref<8x128xf32, #tpu.memory_space<vmem>>, vector<8x128xf32>
      tpu.vector_store %arg6[%c0_77, %c0_78], %155 {strides = array<i32>} : memref<8x128xf32, #tpu.memory_space<vmem>>, vector<8x128xf32>,
      %cst_79 = arith.constant 0.000000e+00 : f32
      %157 = vector.broadcast %cst_79 : f32 to vector<8x128xf32>
      %c0_80 = arith.constant 0 : index
      %c0_81 = arith.constant 0 : index
      %158 = vector.load %arg7[%c0_80, %c0_81] : memref<8x128xf32, #tpu.memory_space<vmem>>, vector<8x128xf32>
      tpu.vector_store %arg7[%c0_80, %c0_81], %157 {strides = array<i32>} : memref<8x128xf32, #tpu.memory_space<vmem>>, vector<8x128xf32>,
      %cst_82 = arith.constant 0xFF800000 : f32
      %159 = vector.broadcast %cst_82 : f32 to vector<8x128xf32>
      %c0_83 = arith.constant 0 : index
      %c0_84 = arith.constant 0 : index
      %160 = vector.load %arg8[%c0_83, %c0_84] : memref<8x128xf32, #tpu.memory_space<vmem>>, vector<8x128xf32>
      tpu.vector_store %arg8[%c0_83, %c0_84], %159 {strides = array<i32>} : memref<8x128xf32, #tpu.memory_space<vmem>>, vector<8x128xf32>,
    } else {
    }
    %c0 = arith.constant 0 : index
    %c0_1 = arith.constant 0 : index
    %3 = vector.load %arg2[%c0, %c0_1] : memref<128x512xf32, #tpu.memory_space<vmem>>, vector<128x512xf32>
    %c0_i32_2 = arith.constant 0 : i32
    %c0_3 = arith.constant 0 : index
    %c0_4 = arith.constant 0 : index
    %4 = vector.load %arg6[%c0_3, %c0_4] : memref<8x128xf32, #tpu.memory_space<vmem>>, vector<8x128xf32>
    %c0_5 = arith.constant 0 : index
    %c0_6 = arith.constant 0 : index
    %5 = vector.load %arg7[%c0_5, %c0_6] : memref<8x128xf32, #tpu.memory_space<vmem>>, vector<8x128xf32>
    %6 = arith.index_cast %c0_i32_2 : i32 to index
    %c0_7 = arith.constant 0 : index
    %c0_8 = arith.constant 0 : index
    %7 = vector.load %arg1[%6, %c0_7, %c0_8] : memref<4x8x512xf32, #tpu.memory_space<vmem>>, vector<1x8x512xf32>
    %8 = vector.shape_cast %7 : vector<1x8x512xf32> to vector<8x512xf32>
    %cst = arith.constant dense<0.000000e+00> : vector<8x512xf32>
    %9 = tpu.matmul %4, %3, %cst {dimension_numbers = #tpu.dot_dimension_numbers<[1], [0], [0], [1], [0, 0, 1, 1], [], []>} : vector<8x128xf32>, vector<128x512xf32>, vector<8x512xf32> -> vector<8x512xf32>
    %10 = arith.addf %8, %9 : vector<8x512xf32>
    %11 = vector.extract_strided_slice %10 {offsets = [0, 0], sizes = [8, 128], strides = [1, 1]} : vector<8x512xf32> to vector<8x128xf32>
    %12 = arith.negf %11 : vector<8x128xf32>
    %13 = math.exp %12 : vector<8x128xf32>
    %cst_9 = arith.constant 1.000000e+00 : f32
    %14 = vector.broadcast %cst_9 : f32 to vector<8x128xf32>
    %15 = arith.addf %14, %13 : vector<8x128xf32>
    %16 = arith.divf %14, %15 : vector<8x128xf32>
    %17 = vector.extract_strided_slice %10 {offsets = [0, 128], sizes = [8, 128], strides = [1, 1]} : vector<8x512xf32> to vector<8x128xf32>
    %18 = arith.negf %17 : vector<8x128xf32>
    %19 = math.exp %18 : vector<8x128xf32>
    %cst_10 = arith.constant 1.000000e+00 : f32
    %20 = vector.broadcast %cst_10 : f32 to vector<8x128xf32>
    %21 = arith.addf %20, %19 : vector<8x128xf32>
    %22 = arith.divf %20, %21 : vector<8x128xf32>
    %23 = vector.extract_strided_slice %10 {offsets = [0, 256], sizes = [8, 128], strides = [1, 1]} : vector<8x512xf32> to vector<8x128xf32>
    %24 = math.tanh %23 : vector<8x128xf32>
    %25 = vector.extract_strided_slice %10 {offsets = [0, 384], sizes = [8, 128], strides = [1, 1]} : vector<8x512xf32> to vector<8x128xf32>
    %26 = arith.negf %25 : vector<8x128xf32>
    %27 = math.exp %26 : vector<8x128xf32>
    %cst_11 = arith.constant 1.000000e+00 : f32
    %28 = vector.broadcast %cst_11 : f32 to vector<8x128xf32>
    %29 = arith.addf %28, %27 : vector<8x128xf32>
    %30 = arith.divf %28, %29 : vector<8x128xf32>
    %31 = arith.mulf %22, %5 : vector<8x128xf32>
    %32 = arith.mulf %16, %24 : vector<8x128xf32>
    %33 = arith.addf %31, %32 : vector<8x128xf32>
    %34 = math.tanh %33 : vector<8x128xf32>
    %35 = arith.mulf %30, %34 : vector<8x128xf32>
    %c0_12 = arith.constant 0 : index
    %c0_13 = arith.constant 0 : index
    %36 = vector.load %arg6[%c0_12, %c0_13] : memref<8x128xf32, #tpu.memory_space<vmem>>, vector<8x128xf32>
    tpu.vector_store %arg6[%c0_12, %c0_13], %35 {strides = array<i32>} : memref<8x128xf32, #tpu.memory_space<vmem>>, vector<8x128xf32>,
    %c0_14 = arith.constant 0 : index
    %c0_15 = arith.constant 0 : index
    %37 = vector.load %arg7[%c0_14, %c0_15] : memref<8x128xf32, #tpu.memory_space<vmem>>, vector<8x128xf32>
    tpu.vector_store %arg7[%c0_14, %c0_15], %33 {strides = array<i32>} : memref<8x128xf32, #tpu.memory_space<vmem>>, vector<8x128xf32>,
    %c0_16 = arith.constant 0 : index
    %c0_17 = arith.constant 0 : index
    %38 = vector.load %arg8[%c0_16, %c0_17] : memref<8x128xf32, #tpu.memory_space<vmem>>, vector<8x128xf32>
    %39 = arith.maximumf %38, %35 : vector<8x128xf32>
    %c0_18 = arith.constant 0 : index
    %c0_19 = arith.constant 0 : index
    %40 = vector.load %arg8[%c0_18, %c0_19] : memref<8x128xf32, #tpu.memory_space<vmem>>, vector<8x128xf32>
    tpu.vector_store %arg8[%c0_18, %c0_19], %39 {strides = array<i32>} : memref<8x128xf32, #tpu.memory_space<vmem>>, vector<8x128xf32>,
    %c1_i32 = arith.constant 1 : i32
    %c0_20 = arith.constant 0 : index
    %c0_21 = arith.constant 0 : index
    %41 = vector.load %arg6[%c0_20, %c0_21] : memref<8x128xf32, #tpu.memory_space<vmem>>, vector<8x128xf32>
    %c0_22 = arith.constant 0 : index
    %c0_23 = arith.constant 0 : index
    %42 = vector.load %arg7[%c0_22, %c0_23] : memref<8x128xf32, #tpu.memory_space<vmem>>, vector<8x128xf32>
    %43 = arith.index_cast %c1_i32 : i32 to index
    %c0_24 = arith.constant 0 : index
    %c0_25 = arith.constant 0 : index
    %44 = vector.load %arg1[%43, %c0_24, %c0_25] : memref<4x8x512xf32, #tpu.memory_space<vmem>>, vector<1x8x512xf32>
    %45 = vector.shape_cast %44 : vector<1x8x512xf32> to vector<8x512xf32>
    %cst_26 = arith.constant dense<0.000000e+00> : vector<8x512xf32>
    %46 = tpu.matmul %41, %3, %cst_26 {dimension_numbers = #tpu.dot_dimension_numbers<[1], [0], [0], [1], [0, 0, 1, 1], [], []>} : vector<8x128xf32>, vector<128x512xf32>, vector<8x512xf32> -> vector<8x512xf32>
    %47 = arith.addf %45, %46 : vector<8x512xf32>
    %48 = vector.extract_strided_slice %47 {offsets = [0, 0], sizes = [8, 128], strides = [1, 1]} : vector<8x512xf32> to vector<8x128xf32>
    %49 = arith.negf %48 : vector<8x128xf32>
    %50 = math.exp %49 : vector<8x128xf32>
    %cst_27 = arith.constant 1.000000e+00 : f32
    %51 = vector.broadcast %cst_27 : f32 to vector<8x128xf32>
    %52 = arith.addf %51, %50 : vector<8x128xf32>
    %53 = arith.divf %51, %52 : vector<8x128xf32>
    %54 = vector.extract_strided_slice %47 {offsets = [0, 128], sizes = [8, 128], strides = [1, 1]} : vector<8x512xf32> to vector<8x128xf32>
    %55 = arith.negf %54 : vector<8x128xf32>
    %56 = math.exp %55 : vector<8x128xf32>
    %cst_28 = arith.constant 1.000000e+00 : f32
    %57 = vector.broadcast %cst_28 : f32 to vector<8x128xf32>
    %58 = arith.addf %57, %56 : vector<8x128xf32>
    %59 = arith.divf %57, %58 : vector<8x128xf32>
    %60 = vector.extract_strided_slice %47 {offsets = [0, 256], sizes = [8, 128], strides = [1, 1]} : vector<8x512xf32> to vector<8x128xf32>
    %61 = math.tanh %60 : vector<8x128xf32>
    %62 = vector.extract_strided_slice %47 {offsets = [0, 384], sizes = [8, 128], strides = [1, 1]} : vector<8x512xf32> to vector<8x128xf32>
    %63 = arith.negf %62 : vector<8x128xf32>
    %64 = math.exp %63 : vector<8x128xf32>
    %cst_29 = arith.constant 1.000000e+00 : f32
    %65 = vector.broadcast %cst_29 : f32 to vector<8x128xf32>
    %66 = arith.addf %65, %64 : vector<8x128xf32>
    %67 = arith.divf %65, %66 : vector<8x128xf32>
    %68 = arith.mulf %59, %42 : vector<8x128xf32>
    %69 = arith.mulf %53, %61 : vector<8x128xf32>
    %70 = arith.addf %68, %69 : vector<8x128xf32>
    %71 = math.tanh %70 : vector<8x128xf32>
    %72 = arith.mulf %67, %71 : vector<8x128xf32>
    %c0_30 = arith.constant 0 : index
    %c0_31 = arith.constant 0 : index
    %73 = vector.load %arg6[%c0_30, %c0_31] : memref<8x128xf32, #tpu.memory_space<vmem>>, vector<8x128xf32>
    tpu.vector_store %arg6[%c0_30, %c0_31], %72 {strides = array<i32>} : memref<8x128xf32, #tpu.memory_space<vmem>>, vector<8x128xf32>,
    %c0_32 = arith.constant 0 : index
    %c0_33 = arith.constant 0 : index
    %74 = vector.load %arg7[%c0_32, %c0_33] : memref<8x128xf32, #tpu.memory_space<vmem>>, vector<8x128xf32>
    tpu.vector_store %arg7[%c0_32, %c0_33], %70 {strides = array<i32>} : memref<8x128xf32, #tpu.memory_space<vmem>>, vector<8x128xf32>,
    %c0_34 = arith.constant 0 : index
    %c0_35 = arith.constant 0 : index
    %75 = vector.load %arg8[%c0_34, %c0_35] : memref<8x128xf32, #tpu.memory_space<vmem>>, vector<8x128xf32>
    %76 = arith.maximumf %75, %72 : vector<8x128xf32>
    %c0_36 = arith.constant 0 : index
    %c0_37 = arith.constant 0 : index
    %77 = vector.load %arg8[%c0_36, %c0_37] : memref<8x128xf32, #tpu.memory_space<vmem>>, vector<8x128xf32>
    tpu.vector_store %arg8[%c0_36, %c0_37], %76 {strides = array<i32>} : memref<8x128xf32, #tpu.memory_space<vmem>>, vector<8x128xf32>,
    %c2_i32 = arith.constant 2 : i32
    %c0_38 = arith.constant 0 : index
    %c0_39 = arith.constant 0 : index
    %78 = vector.load %arg6[%c0_38, %c0_39] : memref<8x128xf32, #tpu.memory_space<vmem>>, vector<8x128xf32>
    %c0_40 = arith.constant 0 : index
    %c0_41 = arith.constant 0 : index
    %79 = vector.load %arg7[%c0_40, %c0_41] : memref<8x128xf32, #tpu.memory_space<vmem>>, vector<8x128xf32>
    %80 = arith.index_cast %c2_i32 : i32 to index
    %c0_42 = arith.constant 0 : index
    %c0_43 = arith.constant 0 : index
    %81 = vector.load %arg1[%80, %c0_42, %c0_43] : memref<4x8x512xf32, #tpu.memory_space<vmem>>, vector<1x8x512xf32>
    %82 = vector.shape_cast %81 : vector<1x8x512xf32> to vector<8x512xf32>
    %cst_44 = arith.constant dense<0.000000e+00> : vector<8x512xf32>
    %83 = tpu.matmul %78, %3, %cst_44 {dimension_numbers = #tpu.dot_dimension_numbers<[1], [0], [0], [1], [0, 0, 1, 1], [], []>} : vector<8x128xf32>, vector<128x512xf32>, vector<8x512xf32> -> vector<8x512xf32>
    %84 = arith.addf %82, %83 : vector<8x512xf32>
    %85 = vector.extract_strided_slice %84 {offsets = [0, 0], sizes = [8, 128], strides = [1, 1]} : vector<8x512xf32> to vector<8x128xf32>
    %86 = arith.negf %85 : vector<8x128xf32>
    %87 = math.exp %86 : vector<8x128xf32>
    %cst_45 = arith.constant 1.000000e+00 : f32
    %88 = vector.broadcast %cst_45 : f32 to vector<8x128xf32>
    %89 = arith.addf %88, %87 : vector<8x128xf32>
    %90 = arith.divf %88, %89 : vector<8x128xf32>
    %91 = vector.extract_strided_slice %84 {offsets = [0, 128], sizes = [8, 128], strides = [1, 1]} : vector<8x512xf32> to vector<8x128xf32>
    %92 = arith.negf %91 : vector<8x128xf32>
    %93 = math.exp %92 : vector<8x128xf32>
    %cst_46 = arith.constant 1.000000e+00 : f32
    %94 = vector.broadcast %cst_46 : f32 to vector<8x128xf32>
    %95 = arith.addf %94, %93 : vector<8x128xf32>
    %96 = arith.divf %94, %95 : vector<8x128xf32>
    %97 = vector.extract_strided_slice %84 {offsets = [0, 256], sizes = [8, 128], strides = [1, 1]} : vector<8x512xf32> to vector<8x128xf32>
    %98 = math.tanh %97 : vector<8x128xf32>
    %99 = vector.extract_strided_slice %84 {offsets = [0, 384], sizes = [8, 128], strides = [1, 1]} : vector<8x512xf32> to vector<8x128xf32>
    %100 = arith.negf %99 : vector<8x128xf32>
    %101 = math.exp %100 : vector<8x128xf32>
    %cst_47 = arith.constant 1.000000e+00 : f32
    %102 = vector.broadcast %cst_47 : f32 to vector<8x128xf32>
    %103 = arith.addf %102, %101 : vector<8x128xf32>
    %104 = arith.divf %102, %103 : vector<8x128xf32>
    %105 = arith.mulf %96, %79 : vector<8x128xf32>
    %106 = arith.mulf %90, %98 : vector<8x128xf32>
    %107 = arith.addf %105, %106 : vector<8x128xf32>
    %108 = math.tanh %107 : vector<8x128xf32>
    %109 = arith.mulf %104, %108 : vector<8x128xf32>
    %c0_48 = arith.constant 0 : index
    %c0_49 = arith.constant 0 : index
    %110 = vector.load %arg6[%c0_48, %c0_49] : memref<8x128xf32, #tpu.memory_space<vmem>>, vector<8x128xf32>
    tpu.vector_store %arg6[%c0_48, %c0_49], %109 {strides = array<i32>} : memref<8x128xf32, #tpu.memory_space<vmem>>, vector<8x128xf32>,
    %c0_50 = arith.constant 0 : index
    %c0_51 = arith.constant 0 : index
    %111 = vector.load %arg7[%c0_50, %c0_51] : memref<8x128xf32, #tpu.memory_space<vmem>>, vector<8x128xf32>
    tpu.vector_store %arg7[%c0_50, %c0_51], %107 {strides = array<i32>} : memref<8x128xf32, #tpu.memory_space<vmem>>, vector<8x128xf32>,
    %c0_52 = arith.constant 0 : index
    %c0_53 = arith.constant 0 : index
    %112 = vector.load %arg8[%c0_52, %c0_53] : memref<8x128xf32, #tpu.memory_space<vmem>>, vector<8x128xf32>
    %113 = arith.maximumf %112, %109 : vector<8x128xf32>
    %c0_54 = arith.constant 0 : index
    %c0_55 = arith.constant 0 : index
    %114 = vector.load %arg8[%c0_54, %c0_55] : memref<8x128xf32, #tpu.memory_space<vmem>>, vector<8x128xf32>
    tpu.vector_store %arg8[%c0_54, %c0_55], %113 {strides = array<i32>} : memref<8x128xf32, #tpu.memory_space<vmem>>, vector<8x128xf32>,
    %c3_i32 = arith.constant 3 : i32
    %c0_56 = arith.constant 0 : index
    %c0_57 = arith.constant 0 : index
    %115 = vector.load %arg6[%c0_56, %c0_57] : memref<8x128xf32, #tpu.memory_space<vmem>>, vector<8x128xf32>
    %c0_58 = arith.constant 0 : index
    %c0_59 = arith.constant 0 : index
    %116 = vector.load %arg7[%c0_58, %c0_59] : memref<8x128xf32, #tpu.memory_space<vmem>>, vector<8x128xf32>
    %117 = arith.index_cast %c3_i32 : i32 to index
    %c0_60 = arith.constant 0 : index
    %c0_61 = arith.constant 0 : index
    %118 = vector.load %arg1[%117, %c0_60, %c0_61] : memref<4x8x512xf32, #tpu.memory_space<vmem>>, vector<1x8x512xf32>
    %119 = vector.shape_cast %118 : vector<1x8x512xf32> to vector<8x512xf32>
    %cst_62 = arith.constant dense<0.000000e+00> : vector<8x512xf32>
    %120 = tpu.matmul %115, %3, %cst_62 {dimension_numbers = #tpu.dot_dimension_numbers<[1], [0], [0], [1], [0, 0, 1, 1], [], []>} : vector<8x128xf32>, vector<128x512xf32>, vector<8x512xf32> -> vector<8x512xf32>
    %121 = arith.addf %119, %120 : vector<8x512xf32>
    %122 = vector.extract_strided_slice %121 {offsets = [0, 0], sizes = [8, 128], strides = [1, 1]} : vector<8x512xf32> to vector<8x128xf32>
    %123 = arith.negf %122 : vector<8x128xf32>
    %124 = math.exp %123 : vector<8x128xf32>
    %cst_63 = arith.constant 1.000000e+00 : f32
    %125 = vector.broadcast %cst_63 : f32 to vector<8x128xf32>
    %126 = arith.addf %125, %124 : vector<8x128xf32>
    %127 = arith.divf %125, %126 : vector<8x128xf32>
    %128 = vector.extract_strided_slice %121 {offsets = [0, 128], sizes = [8, 128], strides = [1, 1]} : vector<8x512xf32> to vector<8x128xf32>
    %129 = arith.negf %128 : vector<8x128xf32>
    %130 = math.exp %129 : vector<8x128xf32>
    %cst_64 = arith.constant 1.000000e+00 : f32
    %131 = vector.broadcast %cst_64 : f32 to vector<8x128xf32>
    %132 = arith.addf %131, %130 : vector<8x128xf32>
    %133 = arith.divf %131, %132 : vector<8x128xf32>
    %134 = vector.extract_strided_slice %121 {offsets = [0, 256], sizes = [8, 128], strides = [1, 1]} : vector<8x512xf32> to vector<8x128xf32>
    %135 = math.tanh %134 : vector<8x128xf32>
    %136 = vector.extract_strided_slice %121 {offsets = [0, 384], sizes = [8, 128], strides = [1, 1]} : vector<8x512xf32> to vector<8x128xf32>
    %137 = arith.negf %136 : vector<8x128xf32>
    %138 = math.exp %137 : vector<8x128xf32>
    %cst_65 = arith.constant 1.000000e+00 : f32
    %139 = vector.broadcast %cst_65 : f32 to vector<8x128xf32>
    %140 = arith.addf %139, %138 : vector<8x128xf32>
    %141 = arith.divf %139, %140 : vector<8x128xf32>
    %142 = arith.mulf %133, %116 : vector<8x128xf32>
    %143 = arith.mulf %127, %135 : vector<8x128xf32>
    %144 = arith.addf %142, %143 : vector<8x128xf32>
    %145 = math.tanh %144 : vector<8x128xf32>
    %146 = arith.mulf %141, %145 : vector<8x128xf32>
    %c0_66 = arith.constant 0 : index
    %c0_67 = arith.constant 0 : index
    %147 = vector.load %arg6[%c0_66, %c0_67] : memref<8x128xf32, #tpu.memory_space<vmem>>, vector<8x128xf32>
    tpu.vector_store %arg6[%c0_66, %c0_67], %146 {strides = array<i32>} : memref<8x128xf32, #tpu.memory_space<vmem>>, vector<8x128xf32>,
    %c0_68 = arith.constant 0 : index
    %c0_69 = arith.constant 0 : index
    %148 = vector.load %arg7[%c0_68, %c0_69] : memref<8x128xf32, #tpu.memory_space<vmem>>, vector<8x128xf32>
    tpu.vector_store %arg7[%c0_68, %c0_69], %144 {strides = array<i32>} : memref<8x128xf32, #tpu.memory_space<vmem>>, vector<8x128xf32>,
    %c0_70 = arith.constant 0 : index
    %c0_71 = arith.constant 0 : index
    %149 = vector.load %arg8[%c0_70, %c0_71] : memref<8x128xf32, #tpu.memory_space<vmem>>, vector<8x128xf32>
    %150 = arith.maximumf %149, %146 : vector<8x128xf32>
    %c0_72 = arith.constant 0 : index
    %c0_73 = arith.constant 0 : index
    %151 = vector.load %arg8[%c0_72, %c0_73] : memref<8x128xf32, #tpu.memory_space<vmem>>, vector<8x128xf32>
    tpu.vector_store %arg8[%c0_72, %c0_73], %150 {strides = array<i32>} : memref<8x128xf32, #tpu.memory_space<vmem>>, vector<8x128xf32>,
    %c4_i32 = arith.constant 4 : i32
    %c1_i32_74 = arith.constant 1 : i32
    %152 = arith.cmpi eq, %arg0, %c1_i32_74 : i32
    %153 = arith.extui %152 : i1 to i32
    %c0_i32_75 = arith.constant 0 : i32
    %154 = arith.cmpi ne, %153, %c0_i32_75 : i32
    scf.if %154 {
      %c0_76 = arith.constant 0 : index
      %c0_77 = arith.constant 0 : index
      %155 = vector.load %arg8[%c0_76, %c0_77] : memref<8x128xf32, #tpu.memory_space<vmem>>, vector<8x128xf32>
      %c0_78 = arith.constant 0 : index
      %c0_79 = arith.constant 0 : index
      %156 = vector.load %arg3[%c0_78, %c0_79] : memref<128x128xf32, #tpu.memory_space<vmem>>, vector<128x128xf32>
      %cst_80 = arith.constant dense<0.000000e+00> : vector<8x128xf32>
      %157 = tpu.matmul %155, %156, %cst_80 {dimension_numbers = #tpu.dot_dimension_numbers<[1], [0], [0], [1], [0, 0, 1, 1], [], []>} : vector<8x128xf32>, vector<128x128xf32>, vector<8x128xf32> -> vector<8x128xf32>
      %c0_81 = arith.constant 0 : index
      %c0_82 = arith.constant 0 : index
      %158 = vector.load %arg4[%c0_81, %c0_82] : memref<1x128xf32, #tpu.memory_space<vmem>>, vector<1x128xf32>
      %159 = vector.broadcast %158 : vector<1x128xf32> to vector<8x128xf32>
      %160 = arith.addf %157, %159 : vector<8x128xf32>
      %c0_83 = arith.constant 0 : index
      %c0_84 = arith.constant 0 : index
      %161 = vector.load %arg5[%c0_83, %c0_84] : memref<8x128xf32, #tpu.memory_space<vmem>>, vector<8x128xf32>
      tpu.vector_store %arg5[%c0_83, %c0_84], %160 {strides = array<i32>} : memref<8x128xf32, #tpu.memory_space<vmem>>, vector<8x128xf32>,
    } else {
    }
    return
  }
  func.func @transform_0(%arg0: i32) -> (i32, i32, i32) {
    %c0_i32 = arith.constant 0 : i32
    %c0_i32_0 = arith.constant 0 : i32
    %c0_i32_1 = arith.constant 0 : i32
    return %arg0, %c0_i32, %c0_i32_0 : i32, i32, i32
  }
  func.func @transform_1(%arg0: i32) -> (i32, i32) {
    %c0_i32 = arith.constant 0 : i32
    %c0_i32_0 = arith.constant 0 : i32
    %c0_i32_1 = arith.constant 0 : i32
    return %c0_i32, %c0_i32_0 : i32, i32
  }
  func.func @transform_2(%arg0: i32) -> (i32, i32) {
    %c0_i32 = arith.constant 0 : i32
    %c0_i32_0 = arith.constant 0 : i32
    %c0_i32_1 = arith.constant 0 : i32
    return %c0_i32, %c0_i32_0 : i32, i32
  }
  func.func @transform_3(%arg0: i32) -> (i32, i32) {
    %c0_i32 = arith.constant 0 : i32
    %c0_i32_0 = arith.constant 0 : i32
    %c0_i32_1 = arith.constant 0 : i32
    return %c0_i32, %c0_i32_0 : i32, i32
  }
  func.func @transform_4(%arg0: i32) -> (i32, i32) {
    %c0_i32 = arith.constant 0 : i32
    %c0_i32_0 = arith.constant 0 : i32
    %c0_i32_1 = arith.constant 0 : i32
    return %c0_i32, %c0_i32_0 : i32, i32
  }
}

</mosaic_0001>

<llo_original>
// kernel: seq2seq_forward.1
$region0: #{seq2seq_forward.1}
  #allocation0 [shape = 'u32[]', space=smem, size = 0x4, offset = 0x4, fixed_abs, tag = 'smem constant byte address 0x4 - core index']
  #allocation1 [shape = 'u32[72,128]{1,0:T(1,128)}', space=vmem, size = 0x9000, scoped, tag = 'internal scratch']
  #allocation2 [shape = 'f32[8,128]{1,0:T(8,128)}', space=vmem, size = 0x1000, scoped, tag = 'scratch operand']
  #allocation3 [shape = 'f32[8,128]{1,0:T(8,128)}', space=vmem, size = 0x1000, scoped, tag = 'scratch operand']
  #allocation4 [shape = 'f32[8,128]{1,0:T(8,128)}', space=vmem, size = 0x1000, scoped, tag = 'scratch operand']
  %s0 = inlined_call_operand.vmem [shape: f32[8,8,512], index: 0, kind: input, shape index: {}]
  %s1 = inlined_call_operand.vmem [shape: f32[128,512], index: 1, kind: input, shape index: {}]
  %s2 = inlined_call_operand.vmem [shape: f32[128,128], index: 2, kind: input, shape index: {}]
  %s3 = inlined_call_operand.vmem [shape: f32[1,128], index: 3, kind: input, shape index: {}]
  %s4 = inlined_call_operand.vmem [shape: f32[8,128], index: 4, kind: output, shape index: {}]
  %s5 = sld [smem:[#allocation0]]
  $region57: #{seq2seq_forward.1} parent=0
    _
  %s7 = ssub.s32 1, %s5
  %s8 = scalar_select 0, %s7, %s5
  loop: start=0, step=1, limit=4
  $region2: #{seq2seq_forward.1} parent=0 // loop_pre_header
    _
  $region3: #{seq2seq_forward.1} parent=0 // loop_header
    %s10 = sphi 0, %s14
    %p11 = scmp.ge.s32.totalorder %s10, 4
    %s20 = sphi 0, %s22
    %s23 = sphi 0, %s20
    %s24 = sphi 0, %s23
    %s40 = sphi 0, %s24
    %s44 = sphi 0, %s44
    %s46 = sphi 0, %s44
    %s47 = sphi 0, %s46
    %s61 = sphi 0, %s47
    %s65 = sphi 0, %s65
    %s67 = sphi 0, %s65
    %s68 = sphi 0, %s67
    %s82 = sphi 0, %s68
    %s86 = sphi 0, %s86
    %s88 = sphi 0, %s86
    %s89 = sphi 0, %s88
    %s103 = sphi 0, %s89
    %s107 = sphi 0, %s107
    %s109 = sphi 0, %s107
    %s110 = sphi 0, %s109
    %s124 = sphi 0, %s110
  $region4: #{seq2seq_forward.1} parent=0 // loop_header_branch
    %13 = sbr.rel (%p11) target = $region8
  $region5: #{seq2seq_forward.1} parent=0 // loop_body
    %s15 = ssub.s32 %s10, 1
    %s16 = ssub.s32 %s10, 2
    %s17 = sadd.s32 %s10, 1
    %s18 = ssub.s32 %s10, %s17
    %p19 = scmp.eq.s32.totalorder %s18, 0
    %s21 = sadd.s32 %s20, 1
    %s22 = scalar_select %p19, %s20, %s21
    %p25 = pneg %p19
    %p26 = scmp.eq.s32.totalorder %s10, 1
    %p27 = por %p25, %p26
    %p28 = scmp.ne.s32.totalorder %s20, %s23
    %p29 = scmp.eq.s32.totalorder %s10, 0
    %p30 = por %p28, %p29
    %p31 = scmp.ne.s32.totalorder %s20, %s23
    %p32 = scmp.eq.s32.totalorder %s15, 1
    %p33 = por %p31, %p32
    %p34 = scmp.ne.s32.totalorder %s23, %s24
    %p35 = scmp.eq.s32.totalorder %s15, 0
    %p36 = por %p34, %p35
    %p37 = scmp.ne.s32.totalorder %s23, %s24
    %p38 = scmp.eq.s32.totalorder %s16, 1
    %p39 = por %p37, %p38
    %p41 = scmp.ne.s32.totalorder %s24, %s40
    %p42 = scmp.eq.s32.totalorder %s16, 0
    %p43 = por %p41, %p42
    %s45 = sadd.s32 %s44, 1
    %p48 = scmp.eq.s32.totalorder %s10, 1
    %p49 = scmp.ne.s32.totalorder %s44, %s46
    %p50 = scmp.eq.s32.totalorder %s10, 0
    %p51 = por %p49, %p50
    %p52 = scmp.ne.s32.totalorder %s44, %s46
    %p53 = scmp.eq.s32.totalorder %s15, 1
    %p54 = por %p52, %p53
    %p55 = scmp.ne.s32.totalorder %s46, %s47
    %p56 = scmp.eq.s32.totalorder %s15, 0
    %p57 = por %p55, %p56
    %p58 = scmp.ne.s32.totalorder %s46, %s47
    %p59 = scmp.eq.s32.totalorder %s16, 1
    %p60 = por %p58, %p59
    %p62 = scmp.ne.s32.totalorder %s47, %s61
    %p63 = scmp.eq.s32.totalorder %s16, 0
    %p64 = por %p62, %p63
    %s66 = sadd.s32 %s65, 1
    %p69 = scmp.eq.s32.totalorder %s10, 1
    %p70 = scmp.ne.s32.totalorder %s65, %s67
    %p71 = scmp.eq.s32.totalorder %s10, 0
    %p72 = por %p70, %p71
    %p73 = scmp.ne.s32.totalorder %s65, %s67
    %p74 = scmp.eq.s32.totalorder %s15, 1
    %p75 = por %p73, %p74
    %p76 = scmp.ne.s32.totalorder %s67, %s68
    %p77 = scmp.eq.s32.totalorder %s15, 0
    %p78 = por %p76, %p77
    %p79 = scmp.ne.s32.totalorder %s67, %s68
    %p80 = scmp.eq.s32.totalorder %s16, 1
    %p81 = por %p79, %p80
    %p83 = scmp.ne.s32.totalorder %s68, %s82
    %p84 = scmp.eq.s32.totalorder %s16, 0
    %p85 = por %p83, %p84
    %s87 = sadd.s32 %s86, 1
    %p90 = scmp.eq.s32.totalorder %s10, 1
    %p91 = scmp.ne.s32.totalorder %s86, %s88
    %p92 = scmp.eq.s32.totalorder %s10, 0
    %p93 = por %p91, %p92
    %p94 = scmp.ne.s32.totalorder %s86, %s88
    %p95 = scmp.eq.s32.totalorder %s15, 1
    %p96 = por %p94, %p95
    %p97 = scmp.ne.s32.totalorder %s88, %s89
    %p98 = scmp.eq.s32.totalorder %s15, 0
    %p99 = por %p97, %p98
    %p100 = scmp.ne.s32.totalorder %s88, %s89
    %p101 = scmp.eq.s32.totalorder %s16, 1
    %p102 = por %p100, %p101
    %p104 = scmp.ne.s32.totalorder %s89, %s103
    %p105 = scmp.eq.s32.totalorder %s16, 0
    %p106 = por %p104, %p105
    %s108 = sadd.s32 %s107, 1
    %p111 = scmp.eq.s32.totalorder %s10, 1
    %p112 = scmp.ne.s32.totalorder %s107, %s109
    %p113 = scmp.eq.s32.totalorder %s10, 0
    %p114 = por %p112, %p113
    %p115 = scmp.ne.s32.totalorder %s107, %s109
    %p116 = scmp.eq.s32.totalorder %s15, 1
    %p117 = por %p115, %p116
    %p118 = scmp.ne.s32.totalorder %s109, %s110
    %p119 = scmp.eq.s32.totalorder %s15, 0
    %p120 = por %p118, %p119
    %p121 = scmp.ne.s32.totalorder %s109, %s110
    %p122 = scmp.eq.s32.totalorder %s16, 1
    %p123 = por %p121, %p122
    %p125 = scmp.ne.s32.totalorder %s110, %s124
    %p126 = scmp.eq.s32.totalorder %s16, 0
    %p127 = por %p125, %p126
    %p128 = scmp.le.s32.totalorder 1, %s10
    %p129 = scmp.lt.s32.totalorder %s10, 3
    %p130 = pnand %p128, %p129
    %p131 = pneg %p130
    // Predicated region
    $region9: #{seq2seq_forward.1} parent=5 // pred_check
      _
    $region10: #{seq2seq_forward.1} parent=5 // pred_check_branch
      %133 = sbr.rel (%p130) target = $region12
    $region11: #{seq2seq_forward.1} parent=5 // pred_region
      %s134 = ssub.s32 %s10, 1
      // Predicated region
      $region13: #{seq2seq_forward.1} parent=11 // pred_check
        %p135 = pneg %p57
      $region14: #{seq2seq_forward.1} parent=11 // pred_check_branch
        %137 = sbr.rel (%p135) target = $region16
      $region15: #{seq2seq_forward.1} parent=11 // pred_region
        _
      $region16: #{seq2seq_forward.1} parent=11 // pred_fallthru
        _
      // Predicated region
      $region17: #{seq2seq_forward.1} parent=11 // pred_check
        %p138 = pneg %p78
      $region18: #{seq2seq_forward.1} parent=11 // pred_check_branch
        %140 = sbr.rel (%p138) target = $region20
      $region19: #{seq2seq_forward.1} parent=11 // pred_region
        _
      $region20: #{seq2seq_forward.1} parent=11 // pred_fallthru
        _
      // Predicated region
      $region21: #{seq2seq_forward.1} parent=11 // pred_check
        %p141 = pneg %p99
      $region22: #{seq2seq_forward.1} parent=11 // pred_check_branch
        %143 = sbr.rel (%p141) target = $region24
      $region23: #{seq2seq_forward.1} parent=11 // pred_region
        _
      $region24: #{seq2seq_forward.1} parent=11 // pred_fallthru
        _
    $region12: #{seq2seq_forward.1} parent=5 // pred_fallthru
      _
    %p144 = scmp.lt.s32.totalorder %s10, 2
    // Predicated region
    $region25: #{seq2seq_forward.1} parent=5 // pred_check
      %p145 = pneg %p144
    $region26: #{seq2seq_forward.1} parent=5 // pred_check_branch
      %147 = sbr.rel (%p145) target = $region28
    $region27: #{seq2seq_forward.1} parent=5 // pred_region
      // Predicated region
      $region29: #{seq2seq_forward.1} parent=27 // pred_check
        %p148 = pneg %p30
      $region30: #{seq2seq_forward.1} parent=27 // pred_check_branch
        %150 = sbr.rel (%p148) target = $region32
      $region31: #{seq2seq_forward.1} parent=27 // pred_region
        %s151 = smul.u32 4, %s10
        %p152 = scmp.lt.s32.totalorder %s151, 7
        %s153 = scalar_select %p152, %s151, 7
        %s154 = smul.addr %s153, 4
        %s155 = smul.addr %s154, 8
        %s156 = scalar_lea.vmem %s0, %s155
        %s157 = smul.u32 4, %s10
      $region32: #{seq2seq_forward.1} parent=27 // pred_fallthru
        _
    $region28: #{seq2seq_forward.1} parent=5 // pred_fallthru
      _
    %p158 = scmp.le.s32.totalorder 1, %s10
    %p159 = scmp.lt.s32.totalorder %s10, 3
    %p160 = pnand %p158, %p159
    %p161 = pneg %p160
    // Predicated region
    $region33: #{seq2seq_forward.1} parent=5 // pred_check
      _
    $region34: #{seq2seq_forward.1} parent=5 // pred_check_branch
      %163 = sbr.rel (%p160) target = $region36
    $region35: #{seq2seq_forward.1} parent=5 // pred_region
      %s164 = ssub.s32 %s10, 1
      %s165 = smul.u32 4, %s15
      %p166 = scmp.lt.s32.totalorder %s165, 7
      %s167 = scalar_select %p166, %s165, 7
      %s168 = smul.addr %s167, 4
      %s169 = smul.addr %s168, 8
      %s170 = scalar_lea.vmem %s0, %s169
      %p171 = pneg %p36
      %p172 = pneg %p33
      %p173 = pneg %p57
      %p174 = pneg %p54
      %p175 = pneg %p78
      %p176 = pneg %p75
      %p177 = pneg %p99
      %p178 = pneg %p96
      %p179 = pneg %p120
      %p180 = pneg %p117
      %s181 = smul.u32 4, %s15
      %p182 = scmp.lt.s32.totalorder %s181, 7
      %s183 = scalar_select %p182, %s181, 7
      %s184 = smul.addr %s183, 4
      %s185 = smul.addr %s184, 8
      %s186 = scalar_lea.vmem %s0, %s185
      %s187 = smul.u32 4, %s15
      %p188 = scmp.eq.s32.totalorder %s15, 0
      // Predicated region
      $region37: #{seq2seq_forward.1} parent=35 // pred_check
        %p189 = pneg %p188
      $region38: #{seq2seq_forward.1} parent=35 // pred_check_branch
        %191 = sbr.rel (%p189) target = $region40
      $region39: #{seq2seq_forward.1} parent=35 // pred_region
        %192 = vst [vmem:[#allocation2] sm:$0xff] 0.0
        %193 = vst [vmem:[#allocation3] sm:$0xff] 0.0
        %194 = vst [vmem:[#allocation4] sm:$0xff] -inf
      $region40: #{seq2seq_forward.1} parent=35 // pred_fallthru
        _
      %v195 = vld [vmem:[%s1] sm:$0xff]
      %v196 = vld [vmem:[%s1 + $0x8] sm:$0xff]
      %v197 = vld [vmem:[%s1 + $0x10] sm:$0xff]
      %v198 = vld [vmem:[%s1 + $0x18] sm:$0xff]
      %v199 = vld [vmem:[%s1 + $0x20] sm:$0xff]
      %v200 = vld [vmem:[%s1 + $0x28] sm:$0xff]
      %v201 = vld [vmem:[%s1 + $0x30] sm:$0xff]
      %v202 = vld [vmem:[%s1 + $0x38] sm:$0xff]
      %v203 = vld [vmem:[%s1 + $0x40] sm:$0xff]
      %v204 = vld [vmem:[%s1 + $0x48] sm:$0xff]
      %v205 = vld [vmem:[%s1 + $0x50] sm:$0xff]
      %v206 = vld [vmem:[%s1 + $0x58] sm:$0xff]
      %v207 = vld [vmem:[%s1 + $0x60] sm:$0xff]
      %v208 = vld [vmem:[%s1 + $0x68] sm:$0xff]
      %v209 = vld [vmem:[%s1 + $0x70] sm:$0xff]
      %v210 = vld [vmem:[%s1 + $0x78] sm:$0xff]
      %v211 = vld [vmem:[%s1 + $0x80] sm:$0xff]
      %v212 = vld [vmem:[%s1 + $0x88] sm:$0xff]
      %v213 = vld [vmem:[%s1 + $0x90] sm:$0xff]
      %v214 = vld [vmem:[%s1 + $0x98] sm:$0xff]
      %v215 = vld [vmem:[%s1 + $0xa0] sm:$0xff]
      %v216 = vld [vmem:[%s1 + $0xa8] sm:$0xff]
      %v217 = vld [vmem:[%s1 + $0xb0] sm:$0xff]
      %v218 = vld [vmem:[%s1 + $0xb8] sm:$0xff]
      %v219 = vld [vmem:[%s1 + $0xc0] sm:$0xff]
      %v220 = vld [vmem:[%s1 + $0xc8] sm:$0xff]
      %v221 = vld [vmem:[%s1 + $0xd0] sm:$0xff]
      %v222 = vld [vmem:[%s1 + $0xd8] sm:$0xff]
      %v223 = vld [vmem:[%s1 + $0xe0] sm:$0xff]
      %v224 = vld [vmem:[%s1 + $0xe8] sm:$0xff]
      %v225 = vld [vmem:[%s1 + $0xf0] sm:$0xff]
      %v226 = vld [vmem:[%s1 + $0xf8] sm:$0xff]
      %v227 = vld [vmem:[%s1 + $0x100] sm:$0xff]
      %v228 = vld [vmem:[%s1 + $0x108] sm:$0xff]
      %v229 = vld [vmem:[%s1 + $0x110] sm:$0xff]
      %v230 = vld [vmem:[%s1 + $0x118] sm:$0xff]
      %v231 = vld [vmem:[%s1 + $0x120] sm:$0xff]
      %v232 = vld [vmem:[%s1 + $0x128] sm:$0xff]
      %v233 = vld [vmem:[%s1 + $0x130] sm:$0xff]
      %v234 = vld [vmem:[%s1 + $0x138] sm:$0xff]
      %v235 = vld [vmem:[%s1 + $0x140] sm:$0xff]
      %v236 = vld [vmem:[%s1 + $0x148] sm:$0xff]
      %v237 = vld [vmem:[%s1 + $0x150] sm:$0xff]
      %v238 = vld [vmem:[%s1 + $0x158] sm:$0xff]
      %v239 = vld [vmem:[%s1 + $0x160] sm:$0xff]
      %v240 = vld [vmem:[%s1 + $0x168] sm:$0xff]
      %v241 = vld [vmem:[%s1 + $0x170] sm:$0xff]
      %v242 = vld [vmem:[%s1 + $0x178] sm:$0xff]
      %v243 = vld [vmem:[%s1 + $0x180] sm:$0xff]
      %v244 = vld [vmem:[%s1 + $0x188] sm:$0xff]
      %v245 = vld [vmem:[%s1 + $0x190] sm:$0xff]
      %v246 = vld [vmem:[%s1 + $0x198] sm:$0xff]
      %v247 = vld [vmem:[%s1 + $0x1a0] sm:$0xff]
      %v248 = vld [vmem:[%s1 + $0x1a8] sm:$0xff]
      %v249 = vld [vmem:[%s1 + $0x1b0] sm:$0xff]
      %v250 = vld [vmem:[%s1 + $0x1b8] sm:$0xff]
      %v251 = vld [vmem:[%s1 + $0x1c0] sm:$0xff]
      %v252 = vld [vmem:[%s1 + $0x1c8] sm:$0xff]
      %v253 = vld [vmem:[%s1 + $0x1d0] sm:$0xff]
      %v254 = vld [vmem:[%s1 + $0x1d8] sm:$0xff]
      %v255 = vld [vmem:[%s1 + $0x1e0] sm:$0xff]
      %v256 = vld [vmem:[%s1 + $0x1e8] sm:$0xff]
      %v257 = vld [vmem:[%s1 + $0x1f0] sm:$0xff]
      %v258 = vld [vmem:[%s1 + $0x1f8] sm:$0xff]
      %v259 = vld [vmem:[#allocation2] sm:$0xff]
      %v260 = vld [vmem:[#allocation3] sm:$0xff]
      %v261 = vld [vmem:[%s186] sm:$0xff]
      %v262 = vld [vmem:[%s186 + $0x8] sm:$0xff]
      %v263 = vld [vmem:[%s186 + $0x10] sm:$0xff]
      %v264 = vld [vmem:[%s186 + $0x18] sm:$0xff]
      %265 = vmatpush.msra.mxu0 %v255
      %266 = vmatpush.msra.mxu0 %v251
      %267 = vmatpush.msra.mxu0 %v247
      %268 = vmatpush.msra.mxu0 %v243
      %269 = vmatpush.msra.mxu0 %v239
      %270 = vmatpush.msra.mxu0 %v235
      %271 = vmatpush.msra.mxu0 %v231
      %272 = vmatpush.msra.mxu0 %v227
      %273 = vmatpush.msra.mxu0 %v223
      %274 = vmatpush.msra.mxu0 %v219
      %275 = vmatpush.msra.mxu0 %v215
      %276 = vmatpush.msra.mxu0 %v211
      %277 = vmatpush.msra.mxu0 %v207
      %278 = vmatpush.msra.mxu0 %v203
      %279 = vmatpush.msra.mxu0 %v199
      %280 = vmatpush.msra.mxu0 %v195
      %281 = vmatmul.f32.gmra.mxu0 %v259
      %v282 = vpop.f32.mrf.mxu0
      %v283 = vadd.f32 0.0, %v282
      %284 = vdwg.mxu0
      %285 = vmatpush.msra.mxu0 %v256
      %286 = vmatpush.msra.mxu0 %v252
      %287 = vmatpush.msra.mxu0 %v248
      %288 = vmatpush.msra.mxu0 %v244
      %289 = vmatpush.msra.mxu0 %v240
      %290 = vmatpush.msra.mxu0 %v236
      %291 = vmatpush.msra.mxu0 %v232
      %292 = vmatpush.msra.mxu0 %v228
      %293 = vmatpush.msra.mxu0 %v224
      %294 = vmatpush.msra.mxu0 %v220
      %295 = vmatpush.msra.mxu0 %v216
      %296 = vmatpush.msra.mxu0 %v212
      %297 = vmatpush.msra.mxu0 %v208
      %298 = vmatpush.msra.mxu0 %v204
      %299 = vmatpush.msra.mxu0 %v200
      %300 = vmatpush.msra.mxu0 %v196
      %301 = vmatmul.f32.gmra.mxu0 %v259
      %v302 = vpop.f32.mrf.mxu0
      %v303 = vadd.f32 0.0, %v302
      %304 = vdwg.mxu0
      %305 = vmatpush.msra.mxu0 %v257
      %306 = vmatpush.msra.mxu0 %v253
      %307 = vmatpush.msra.mxu0 %v249
      %308 = vmatpush.msra.mxu0 %v245
      %309 = vmatpush.msra.mxu0 %v241
      %310 = vmatpush.msra.mxu0 %v237
      %311 = vmatpush.msra.mxu0 %v233
      %312 = vmatpush.msra.mxu0 %v229
      %313 = vmatpush.msra.mxu0 %v225
      %314 = vmatpush.msra.mxu0 %v221
      %315 = vmatpush.msra.mxu0 %v217
      %316 = vmatpush.msra.mxu0 %v213
      %317 = vmatpush.msra.mxu0 %v209
      %318 = vmatpush.msra.mxu0 %v205
      %319 = vmatpush.msra.mxu0 %v201
      %320 = vmatpush.msra.mxu0 %v197
      %321 = vmatmul.f32.gmra.mxu0 %v259
      %v322 = vpop.f32.mrf.mxu0
      %v323 = vadd.f32 0.0, %v322
      %324 = vdwg.mxu0
      %325 = vmatpush.msra.mxu0 %v258
      %326 = vmatpush.msra.mxu0 %v254
      %327 = vmatpush.msra.mxu0 %v250
      %328 = vmatpush.msra.mxu0 %v246
      %329 = vmatpush.msra.mxu0 %v242
      %330 = vmatpush.msra.mxu0 %v238
      %331 = vmatpush.msra.mxu0 %v234
      %332 = vmatpush.msra.mxu0 %v230
      %333 = vmatpush.msra.mxu0 %v226
      %334 = vmatpush.msra.mxu0 %v222
      %335 = vmatpush.msra.mxu0 %v218
      %336 = vmatpush.msra.mxu0 %v214
      %337 = vmatpush.msra.mxu0 %v210
      %338 = vmatpush.msra.mxu0 %v206
      %339 = vmatpush.msra.mxu0 %v202
      %340 = vmatpush.msra.mxu0 %v198
      %341 = vmatmul.f32.gmra.mxu0 %v259
      %v342 = vpop.f32.mrf.mxu0
      %v343 = vadd.f32 0.0, %v342
      %344 = vdwg.mxu0
      %v345 = vadd.f32 %v261, %v283
      %v346 = vadd.f32 %v262, %v303
      %v347 = vadd.f32 %v263, %v323
      %v348 = vadd.f32 %v264, %v343
      %v349 = vxor.u32 %v345, 2147483648
      %v350 = vmul.f32 %v349, 1.442695
      %v351 = vpow.pop %v350
      %v352 = vadd.f32 %v351, 1.0
      %v353 = vrcp.pop %v352
      %v354 = vmul.f32 %v352, %v353
      %v355 = vsub.f32 1.0, %v354
      %v356 = vmul.f32 %v353, %v355
      %v357 = vadd.f32 %v353, %v356
      %vm358 = vweird.f32 %v352
      %vm359 = vweird.f32 %v353
      %vm360 = vmor %vm358, %vm359
      %v361 = vsel %vm360, %v353, %v357
      %v362 = vand.u32 2147483647, %v352
      %vm363 = vcmp.eq.f32.partialorder %v362, 8.507059e+37
      %v364 = vand.u32 %v352, 2147483648
      %v365 = vor.u32 1.1754944e-38, %v364
      %v366 = vsel %vm363, %v365, %v361
      %v367 = vmul.f32 1.0, %v366
      %v368 = vxor.u32 %v346, 2147483648
      %v369 = vmul.f32 %v368, 1.442695
      %v370 = vpow.pop %v369
      %v371 = vadd.f32 %v370, 1.0
      %v372 = vrcp.pop %v371
      %v373 = vmul.f32 %v371, %v372
      %v374 = vsub.f32 1.0, %v373
      %v375 = vmul.f32 %v372, %v374
      %v376 = vadd.f32 %v372, %v375
      %vm377 = vweird.f32 %v371
      %vm378 = vweird.f32 %v372
      %vm379 = vmor %vm377, %vm378
      %v380 = vsel %vm379, %v372, %v376
      %v381 = vand.u32 2147483647, %v371
      %vm382 = vcmp.eq.f32.partialorder %v381, 8.507059e+37
      %v383 = vand.u32 %v371, 2147483648
      %v384 = vor.u32 1.1754944e-38, %v383
      %v385 = vsel %vm382, %v384, %v380
      %v386 = vmul.f32 1.0, %v385
      %v387 = vtanh.pop %v347
      %v388 = vxor.u32 %v348, 2147483648
      %v389 = vmul.f32 %v388, 1.442695
      %v390 = vpow.pop %v389
      %v391 = vadd.f32 %v390, 1.0
      %v392 = vrcp.pop %v391
      %v393 = vmul.f32 %v391, %v392
      %v394 = vsub.f32 1.0, %v393
      %v395 = vmul.f32 %v392, %v394
      %v396 = vadd.f32 %v392, %v395
      %vm397 = vweird.f32 %v391
      %vm398 = vweird.f32 %v392
      %vm399 = vmor %vm397, %vm398
      %v400 = vsel %vm399, %v392, %v396
      %v401 = vand.u32 2147483647, %v391
      %vm402 = vcmp.eq.f32.partialorder %v401, 8.507059e+37
      %v403 = vand.u32 %v391, 2147483648
      %v404 = vor.u32 1.1754944e-38, %v403
      %v405 = vsel %vm402, %v404, %v400
      %v406 = vmul.f32 1.0, %v405
      %v407 = vmul.f32 %v386, %v260
      %v408 = vmul.f32 %v367, %v387
      %v409 = vadd.f32 %v407, %v408
      %v410 = vtanh.pop %v409
      %v411 = vmul.f32 %v406, %v410
      %412 = vst [vmem:[#allocation2] sm:$0xff] %v411
      %413 = vst [vmem:[#allocation3] sm:$0xff] %v409
      %v414 = vld [vmem:[#allocation4] sm:$0xff]
      %v415 = vmax.f32 %v414, %v411
      %416 = vst [vmem:[#allocation4] sm:$0xff] %v415
      %v417 = vld [vmem:[#allocation2] sm:$0xff]
      %v418 = vld [vmem:[#allocation3] sm:$0xff]
      %s419 = scalar_lea.vmem %s186, 32
      %v420 = vld [vmem:[%s419] sm:$0xff]
      %v421 = vld [vmem:[%s419 + $0x8] sm:$0xff]
      %v422 = vld [vmem:[%s419 + $0x10] sm:$0xff]
      %v423 = vld [vmem:[%s419 + $0x18] sm:$0xff]
      %424 = vmatpush.msra.mxu0 %v255
      %425 = vmatpush.msra.mxu0 %v251
      %426 = vmatpush.msra.mxu0 %v247
      %427 = vmatpush.msra.mxu0 %v243
      %428 = vmatpush.msra.mxu0 %v239
      %429 = vmatpush.msra.mxu0 %v235
      %430 = vmatpush.msra.mxu0 %v231
      %431 = vmatpush.msra.mxu0 %v227
      %432 = vmatpush.msra.mxu0 %v223
      %433 = vmatpush.msra.mxu0 %v219
      %434 = vmatpush.msra.mxu0 %v215
      %435 = vmatpush.msra.mxu0 %v211
      %436 = vmatpush.msra.mxu0 %v207
      %437 = vmatpush.msra.mxu0 %v203
      %438 = vmatpush.msra.mxu0 %v199
      %439 = vmatpush.msra.mxu0 %v195
      %440 = vmatmul.f32.gmra.mxu0 %v417
      %v441 = vpop.f32.mrf.mxu0
      %v442 = vadd.f32 0.0, %v441
      %443 = vdwg.mxu0
      %444 = vmatpush.msra.mxu0 %v256
      %445 = vmatpush.msra.mxu0 %v252
      %446 = vmatpush.msra.mxu0 %v248
      %447 = vmatpush.msra.mxu0 %v244
      %448 = vmatpush.msra.mxu0 %v240
      %449 = vmatpush.msra.mxu0 %v236
      %450 = vmatpush.msra.mxu0 %v232
      %451 = vmatpush.msra.mxu0 %v228
      %452 = vmatpush.msra.mxu0 %v224
      %453 = vmatpush.msra.mxu0 %v220
      %454 = vmatpush.msra.mxu0 %v216
      %455 = vmatpush.msra.mxu0 %v212
      %456 = vmatpush.msra.mxu0 %v208
      %457 = vmatpush.msra.mxu0 %v204
      %458 = vmatpush.msra.mxu0 %v200
      %459 = vmatpush.msra.mxu0 %v196
      %460 = vmatmul.f32.gmra.mxu0 %v417
      %v461 = vpop.f32.mrf.mxu0
      %v462 = vadd.f32 0.0, %v461
      %463 = vdwg.mxu0
      %464 = vmatpush.msra.mxu0 %v257
      %465 = vmatpush.msra.mxu0 %v253
      %466 = vmatpush.msra.mxu0 %v249
      %467 = vmatpush.msra.mxu0 %v245
      %468 = vmatpush.msra.mxu0 %v241
      %469 = vmatpush.msra.mxu0 %v237
      %470 = vmatpush.msra.mxu0 %v233
      %471 = vmatpush.msra.mxu0 %v229
      %472 = vmatpush.msra.mxu0 %v225
      %473 = vmatpush.msra.mxu0 %v221
      %474 = vmatpush.msra.mxu0 %v217
      %475 = vmatpush.msra.mxu0 %v213
      %476 = vmatpush.msra.mxu0 %v209
      %477 = vmatpush.msra.mxu0 %v205
      %478 = vmatpush.msra.mxu0 %v201
      %479 = vmatpush.msra.mxu0 %v197
      %480 = vmatmul.f32.gmra.mxu0 %v417
      %v481 = vpop.f32.mrf.mxu0
      %v482 = vadd.f32 0.0, %v481
      %483 = vdwg.mxu0
      %484 = vmatpush.msra.mxu0 %v258
      %485 = vmatpush.msra.mxu0 %v254
      %486 = vmatpush.msra.mxu0 %v250
      %487 = vmatpush.msra.mxu0 %v246
      %488 = vmatpush.msra.mxu0 %v242
      %489 = vmatpush.msra.mxu0 %v238
      %490 = vmatpush.msra.mxu0 %v234
      %491 = vmatpush.msra.mxu0 %v230
      %492 = vmatpush.msra.mxu0 %v226
      %493 = vmatpush.msra.mxu0 %v222
      %494 = vmatpush.msra.mxu0 %v218
      %495 = vmatpush.msra.mxu0 %v214
      %496 = vmatpush.msra.mxu0 %v210
      %497 = vmatpush.msra.mxu0 %v206
      %498 = vmatpush.msra.mxu0 %v202
      %499 = vmatpush.msra.mxu0 %v198
      %500 = vmatmul.f32.gmra.mxu0 %v417
      %v501 = vpop.f32.mrf.mxu0
      %v502 = vadd.f32 0.0, %v501
      %503 = vdwg.mxu0
      %v504 = vadd.f32 %v420, %v442
      %v505 = vadd.f32 %v421, %v462
      %v506 = vadd.f32 %v422, %v482
      %v507 = vadd.f32 %v423, %v502
      %v508 = vxor.u32 %v504, 2147483648
      %v509 = vmul.f32 %v508, 1.442695
      %v510 = vpow.pop %v509
      %v511 = vadd.f32 %v510, 1.0
      %v512 = vrcp.pop %v511
      %v513 = vmul.f32 %v511, %v512
      %v514 = vsub.f32 1.0, %v513
      %v515 = vmul.f32 %v512, %v514
      %v516 = vadd.f32 %v512, %v515
      %vm517 = vweird.f32 %v511
      %vm518 = vweird.f32 %v512
      %vm519 = vmor %vm517, %vm518
      %v520 = vsel %vm519, %v512, %v516
      %v521 = vand.u32 2147483647, %v511
      %vm522 = vcmp.eq.f32.partialorder %v521, 8.507059e+37
      %v523 = vand.u32 %v511, 2147483648
      %v524 = vor.u32 1.1754944e-38, %v523
      %v525 = vsel %vm522, %v524, %v520
      %v526 = vmul.f32 1.0, %v525
      %v527 = vxor.u32 %v505, 2147483648
      %v528 = vmul.f32 %v527, 1.442695
      %v529 = vpow.pop %v528
      %v530 = vadd.f32 %v529, 1.0
      %v531 = vrcp.pop %v530
      %v532 = vmul.f32 %v530, %v531
      %v533 = vsub.f32 1.0, %v532
      %v534 = vmul.f32 %v531, %v533
      %v535 = vadd.f32 %v531, %v534
      %vm536 = vweird.f32 %v530
      %vm537 = vweird.f32 %v531
      %vm538 = vmor %vm536, %vm537
      %v539 = vsel %vm538, %v531, %v535
      %v540 = vand.u32 2147483647, %v530
      %vm541 = vcmp.eq.f32.partialorder %v540, 8.507059e+37
      %v542 = vand.u32 %v530, 2147483648
      %v543 = vor.u32 1.1754944e-38, %v542
      %v544 = vsel %vm541, %v543, %v539
      %v545 = vmul.f32 1.0, %v544
      %v546 = vtanh.pop %v506
      %v547 = vxor.u32 %v507, 2147483648
      %v548 = vmul.f32 %v547, 1.442695
      %v549 = vpow.pop %v548
      %v550 = vadd.f32 %v549, 1.0
      %v551 = vrcp.pop %v550
      %v552 = vmul.f32 %v550, %v551
      %v553 = vsub.f32 1.0, %v552
      %v554 = vmul.f32 %v551, %v553
      %v555 = vadd.f32 %v551, %v554
      %vm556 = vweird.f32 %v550
      %vm557 = vweird.f32 %v551
      %vm558 = vmor %vm556, %vm557
      %v559 = vsel %vm558, %v551, %v555
      %v560 = vand.u32 2147483647, %v550
      %vm561 = vcmp.eq.f32.partialorder %v560, 8.507059e+37
      %v562 = vand.u32 %v550, 2147483648
      %v563 = vor.u32 1.1754944e-38, %v562
      %v564 = vsel %vm561, %v563, %v559
      %v565 = vmul.f32 1.0, %v564
      %v566 = vmul.f32 %v545, %v418
      %v567 = vmul.f32 %v526, %v546
      %v568 = vadd.f32 %v566, %v567
      %v569 = vtanh.pop %v568
      %v570 = vmul.f32 %v565, %v569
      %571 = vst [vmem:[#allocation2] sm:$0xff] %v570
      %572 = vst [vmem:[#allocation3] sm:$0xff] %v568
      %v573 = vld [vmem:[#allocation4] sm:$0xff]
      %v574 = vmax.f32 %v573, %v570
      %575 = vst [vmem:[#allocation4] sm:$0xff] %v574
      %v576 = vld [vmem:[#allocation2] sm:$0xff]
      %v577 = vld [vmem:[#allocation3] sm:$0xff]
      %s578 = scalar_lea.vmem %s186, 64
      %v579 = vld [vmem:[%s578] sm:$0xff]
      %v580 = vld [vmem:[%s578 + $0x8] sm:$0xff]
      %v581 = vld [vmem:[%s578 + $0x10] sm:$0xff]
      %v582 = vld [vmem:[%s578 + $0x18] sm:$0xff]
      %583 = vmatpush.msra.mxu0 %v255
      %584 = vmatpush.msra.mxu0 %v251
      %585 = vmatpush.msra.mxu0 %v247
      %586 = vmatpush.msra.mxu0 %v243
      %587 = vmatpush.msra.mxu0 %v239
      %588 = vmatpush.msra.mxu0 %v235
      %589 = vmatpush.msra.mxu0 %v231
      %590 = vmatpush.msra.mxu0 %v227
      %591 = vmatpush.msra.mxu0 %v223
      %592 = vmatpush.msra.mxu0 %v219
      %593 = vmatpush.msra.mxu0 %v215
      %594 = vmatpush.msra.mxu0 %v211
      %595 = vmatpush.msra.mxu0 %v207
      %596 = vmatpush.msra.mxu0 %v203
      %597 = vmatpush.msra.mxu0 %v199
      %598 = vmatpush.msra.mxu0 %v195
      %599 = vmatmul.f32.gmra.mxu0 %v576
      %v600 = vpop.f32.mrf.mxu0
      %v601 = vadd.f32 0.0, %v600
      %602 = vdwg.mxu0
      %603 = vmatpush.msra.mxu0 %v256
      %604 = vmatpush.msra.mxu0 %v252
      %605 = vmatpush.msra.mxu0 %v248
      %606 = vmatpush.msra.mxu0 %v244
      %607 = vmatpush.msra.mxu0 %v240
      %608 = vmatpush.msra.mxu0 %v236
      %609 = vmatpush.msra.mxu0 %v232
      %610 = vmatpush.msra.mxu0 %v228
      %611 = vmatpush.msra.mxu0 %v224
      %612 = vmatpush.msra.mxu0 %v220
      %613 = vmatpush.msra.mxu0 %v216
      %614 = vmatpush.msra.mxu0 %v212
      %615 = vmatpush.msra.mxu0 %v208
      %616 = vmatpush.msra.mxu0 %v204
      %617 = vmatpush.msra.mxu0 %v200
      %618 = vmatpush.msra.mxu0 %v196
      %619 = vmatmul.f32.gmra.mxu0 %v576
      %v620 = vpop.f32.mrf.mxu0
      %v621 = vadd.f32 0.0, %v620
      %622 = vdwg.mxu0
      %623 = vmatpush.msra.mxu0 %v257
      %624 = vmatpush.msra.mxu0 %v253
      %625 = vmatpush.msra.mxu0 %v249
      %626 = vmatpush.msra.mxu0 %v245
      %627 = vmatpush.msra.mxu0 %v241
      %628 = vmatpush.msra.mxu0 %v237
      %629 = vmatpush.msra.mxu0 %v233
      %630 = vmatpush.msra.mxu0 %v229
      %631 = vmatpush.msra.mxu0 %v225
      %632 = vmatpush.msra.mxu0 %v221
      %633 = vmatpush.msra.mxu0 %v217
      %634 = vmatpush.msra.mxu0 %v213
      %635 = vmatpush.msra.mxu0 %v209
      %636 = vmatpush.msra.mxu0 %v205
      %637 = vmatpush.msra.mxu0 %v201
      %638 = vmatpush.msra.mxu0 %v197
      %639 = vmatmul.f32.gmra.mxu0 %v576
      %v640 = vpop.f32.mrf.mxu0
      %v641 = vadd.f32 0.0, %v640
      %642 = vdwg.mxu0
      %643 = vmatpush.msra.mxu0 %v258
      %644 = vmatpush.msra.mxu0 %v254
      %645 = vmatpush.msra.mxu0 %v250
      %646 = vmatpush.msra.mxu0 %v246
      %647 = vmatpush.msra.mxu0 %v242
      %648 = vmatpush.msra.mxu0 %v238
      %649 = vmatpush.msra.mxu0 %v234
      %650 = vmatpush.msra.mxu0 %v230
      %651 = vmatpush.msra.mxu0 %v226
      %652 = vmatpush.msra.mxu0 %v222
      %653 = vmatpush.msra.mxu0 %v218
      %654 = vmatpush.msra.mxu0 %v214
      %655 = vmatpush.msra.mxu0 %v210
      %656 = vmatpush.msra.mxu0 %v206
      %657 = vmatpush.msra.mxu0 %v202
      %658 = vmatpush.msra.mxu0 %v198
      %659 = vmatmul.f32.gmra.mxu0 %v576
      %v660 = vpop.f32.mrf.mxu0
      %v661 = vadd.f32 0.0, %v660
      %662 = vdwg.mxu0
      %v663 = vadd.f32 %v579, %v601
      %v664 = vadd.f32 %v580, %v621
      %v665 = vadd.f32 %v581, %v641
      %v666 = vadd.f32 %v582, %v661
      %v667 = vxor.u32 %v663, 2147483648
      %v668 = vmul.f32 %v667, 1.442695
      %v669 = vpow.pop %v668
      %v670 = vadd.f32 %v669, 1.0
      %v671 = vrcp.pop %v670
      %v672 = vmul.f32 %v670, %v671
      %v673 = vsub.f32 1.0, %v672
      %v674 = vmul.f32 %v671, %v673
      %v675 = vadd.f32 %v671, %v674
      %vm676 = vweird.f32 %v670
      %vm677 = vweird.f32 %v671
      %vm678 = vmor %vm676, %vm677
      %v679 = vsel %vm678, %v671, %v675
      %v680 = vand.u32 2147483647, %v670
      %vm681 = vcmp.eq.f32.partialorder %v680, 8.507059e+37
      %v682 = vand.u32 %v670, 2147483648
      %v683 = vor.u32 1.1754944e-38, %v682
      %v684 = vsel %vm681, %v683, %v679
      %v685 = vmul.f32 1.0, %v684
      %v686 = vxor.u32 %v664, 2147483648
      %v687 = vmul.f32 %v686, 1.442695
      %v688 = vpow.pop %v687
      %v689 = vadd.f32 %v688, 1.0
      %v690 = vrcp.pop %v689
      %v691 = vmul.f32 %v689, %v690
      %v692 = vsub.f32 1.0, %v691
      %v693 = vmul.f32 %v690, %v692
      %v694 = vadd.f32 %v690, %v693
      %vm695 = vweird.f32 %v689
      %vm696 = vweird.f32 %v690
      %vm697 = vmor %vm695, %vm696
      %v698 = vsel %vm697, %v690, %v694
      %v699 = vand.u32 2147483647, %v689
      %vm700 = vcmp.eq.f32.partialorder %v699, 8.507059e+37
      %v701 = vand.u32 %v689, 2147483648
      %v702 = vor.u32 1.1754944e-38, %v701
      %v703 = vsel %vm700, %v702, %v698
      %v704 = vmul.f32 1.0, %v703
      %v705 = vtanh.pop %v665
      %v706 = vxor.u32 %v666, 2147483648
      %v707 = vmul.f32 %v706, 1.442695
      %v708 = vpow.pop %v707
      %v709 = vadd.f32 %v708, 1.0
      %v710 = vrcp.pop %v709
      %v711 = vmul.f32 %v709, %v710
      %v712 = vsub.f32 1.0, %v711
      %v713 = vmul.f32 %v710, %v712
      %v714 = vadd.f32 %v710, %v713
      %vm715 = vweird.f32 %v709
      %vm716 = vweird.f32 %v710
      %vm717 = vmor %vm715, %vm716
      %v718 = vsel %vm717, %v710, %v714
      %v719 = vand.u32 2147483647, %v709
      %vm720 = vcmp.eq.f32.partialorder %v719, 8.507059e+37
      %v721 = vand.u32 %v709, 2147483648
      %v722 = vor.u32 1.1754944e-38, %v721
      %v723 = vsel %vm720, %v722, %v718
      %v724 = vmul.f32 1.0, %v723
      %v725 = vmul.f32 %v704, %v577
      %v726 = vmul.f32 %v685, %v705
      %v727 = vadd.f32 %v725, %v726
      %v728 = vtanh.pop %v727
      %v729 = vmul.f32 %v724, %v728
      %730 = vst [vmem:[#allocation2] sm:$0xff] %v729
      %731 = vst [vmem:[#allocation3] sm:$0xff] %v727
      %v732 = vld [vmem:[#allocation4] sm:$0xff]
      %v733 = vmax.f32 %v732, %v729
      %734 = vst [vmem:[#allocation4] sm:$0xff] %v733
      %v735 = vld [vmem:[#allocation2] sm:$0xff]
      %v736 = vld [vmem:[#allocation3] sm:$0xff]
      %s737 = scalar_lea.vmem %s186, 96
      %v738 = vld [vmem:[%s737] sm:$0xff]
      %v739 = vld [vmem:[%s737 + $0x8] sm:$0xff]
      %v740 = vld [vmem:[%s737 + $0x10] sm:$0xff]
      %v741 = vld [vmem:[%s737 + $0x18] sm:$0xff]
      %742 = vmatpush.msra.mxu0 %v255
      %743 = vmatpush.msra.mxu0 %v251
      %744 = vmatpush.msra.mxu0 %v247
      %745 = vmatpush.msra.mxu0 %v243
      %746 = vmatpush.msra.mxu0 %v239
      %747 = vmatpush.msra.mxu0 %v235
      %748 = vmatpush.msra.mxu0 %v231
      %749 = vmatpush.msra.mxu0 %v227
      %750 = vmatpush.msra.mxu0 %v223
      %751 = vmatpush.msra.mxu0 %v219
      %752 = vmatpush.msra.mxu0 %v215
      %753 = vmatpush.msra.mxu0 %v211
      %754 = vmatpush.msra.mxu0 %v207
      %755 = vmatpush.msra.mxu0 %v203
      %756 = vmatpush.msra.mxu0 %v199
      %757 = vmatpush.msra.mxu0 %v195
      %758 = vmatmul.f32.gmra.mxu0 %v735
      %v759 = vpop.f32.mrf.mxu0
      %v760 = vadd.f32 0.0, %v759
      %761 = vdwg.mxu0
      %762 = vmatpush.msra.mxu0 %v256
      %763 = vmatpush.msra.mxu0 %v252
      %764 = vmatpush.msra.mxu0 %v248
      %765 = vmatpush.msra.mxu0 %v244
      %766 = vmatpush.msra.mxu0 %v240
      %767 = vmatpush.msra.mxu0 %v236
      %768 = vmatpush.msra.mxu0 %v232
      %769 = vmatpush.msra.mxu0 %v228
      %770 = vmatpush.msra.mxu0 %v224
      %771 = vmatpush.msra.mxu0 %v220
      %772 = vmatpush.msra.mxu0 %v216
      %773 = vmatpush.msra.mxu0 %v212
      %774 = vmatpush.msra.mxu0 %v208
      %775 = vmatpush.msra.mxu0 %v204
      %776 = vmatpush.msra.mxu0 %v200
      %777 = vmatpush.msra.mxu0 %v196
      %778 = vmatmul.f32.gmra.mxu0 %v735
      %v779 = vpop.f32.mrf.mxu0
      %v780 = vadd.f32 0.0, %v779
      %781 = vdwg.mxu0
      %782 = vmatpush.msra.mxu0 %v257
      %783 = vmatpush.msra.mxu0 %v253
      %784 = vmatpush.msra.mxu0 %v249
      %785 = vmatpush.msra.mxu0 %v245
      %786 = vmatpush.msra.mxu0 %v241
      %787 = vmatpush.msra.mxu0 %v237
      %788 = vmatpush.msra.mxu0 %v233
      %789 = vmatpush.msra.mxu0 %v229
      %790 = vmatpush.msra.mxu0 %v225
      %791 = vmatpush.msra.mxu0 %v221
      %792 = vmatpush.msra.mxu0 %v217
      %793 = vmatpush.msra.mxu0 %v213
      %794 = vmatpush.msra.mxu0 %v209
      %795 = vmatpush.msra.mxu0 %v205
      %796 = vmatpush.msra.mxu0 %v201
      %797 = vmatpush.msra.mxu0 %v197
      %798 = vmatmul.f32.gmra.mxu0 %v735
      %v799 = vpop.f32.mrf.mxu0
      %v800 = vadd.f32 0.0, %v799
      %801 = vdwg.mxu0
      %802 = vmatpush.msra.mxu0 %v258
      %803 = vmatpush.msra.mxu0 %v254
      %804 = vmatpush.msra.mxu0 %v250
      %805 = vmatpush.msra.mxu0 %v246
      %806 = vmatpush.msra.mxu0 %v242
      %807 = vmatpush.msra.mxu0 %v238
      %808 = vmatpush.msra.mxu0 %v234
      %809 = vmatpush.msra.mxu0 %v230
      %810 = vmatpush.msra.mxu0 %v226
      %811 = vmatpush.msra.mxu0 %v222
      %812 = vmatpush.msra.mxu0 %v218
      %813 = vmatpush.msra.mxu0 %v214
      %814 = vmatpush.msra.mxu0 %v210
      %815 = vmatpush.msra.mxu0 %v206
      %816 = vmatpush.msra.mxu0 %v202
      %817 = vmatpush.msra.mxu0 %v198
      %818 = vmatmul.f32.gmra.mxu0 %v735
      %v819 = vpop.f32.mrf.mxu0
      %v820 = vadd.f32 0.0, %v819
      %821 = vdwg.mxu0
      %v822 = vadd.f32 %v738, %v760
      %v823 = vadd.f32 %v739, %v780
      %v824 = vadd.f32 %v740, %v800
      %v825 = vadd.f32 %v741, %v820
      %v826 = vxor.u32 %v822, 2147483648
      %v827 = vmul.f32 %v826, 1.442695
      %v828 = vpow.pop %v827
      %v829 = vadd.f32 %v828, 1.0
      %v830 = vrcp.pop %v829
      %v831 = vmul.f32 %v829, %v830
      %v832 = vsub.f32 1.0, %v831
      %v833 = vmul.f32 %v830, %v832
      %v834 = vadd.f32 %v830, %v833
      %vm835 = vweird.f32 %v829
      %vm836 = vweird.f32 %v830
      %vm837 = vmor %vm835, %vm836
      %v838 = vsel %vm837, %v830, %v834
      %v839 = vand.u32 2147483647, %v829
      %vm840 = vcmp.eq.f32.partialorder %v839, 8.507059e+37
      %v841 = vand.u32 %v829, 2147483648
      %v842 = vor.u32 1.1754944e-38, %v841
      %v843 = vsel %vm840, %v842, %v838
      %v844 = vmul.f32 1.0, %v843
      %v845 = vxor.u32 %v823, 2147483648
      %v846 = vmul.f32 %v845, 1.442695
      %v847 = vpow.pop %v846
      %v848 = vadd.f32 %v847, 1.0
      %v849 = vrcp.pop %v848
      %v850 = vmul.f32 %v848, %v849
      %v851 = vsub.f32 1.0, %v850
      %v852 = vmul.f32 %v849, %v851
      %v853 = vadd.f32 %v849, %v852
      %vm854 = vweird.f32 %v848
      %vm855 = vweird.f32 %v849
      %vm856 = vmor %vm854, %vm855
      %v857 = vsel %vm856, %v849, %v853
      %v858 = vand.u32 2147483647, %v848
      %vm859 = vcmp.eq.f32.partialorder %v858, 8.507059e+37
      %v860 = vand.u32 %v848, 2147483648
      %v861 = vor.u32 1.1754944e-38, %v860
      %v862 = vsel %vm859, %v861, %v857
      %v863 = vmul.f32 1.0, %v862
      %v864 = vtanh.pop %v824
      %v865 = vxor.u32 %v825, 2147483648
      %v866 = vmul.f32 %v865, 1.442695
      %v867 = vpow.pop %v866
      %v868 = vadd.f32 %v867, 1.0
      %v869 = vrcp.pop %v868
      %v870 = vmul.f32 %v868, %v869
      %v871 = vsub.f32 1.0, %v870
      %v872 = vmul.f32 %v869, %v871
      %v873 = vadd.f32 %v869, %v872
      %vm874 = vweird.f32 %v868
      %vm875 = vweird.f32 %v869
      %vm876 = vmor %vm874, %vm875
      %v877 = vsel %vm876, %v869, %v873
      %v878 = vand.u32 2147483647, %v868
      %vm879 = vcmp.eq.f32.partialorder %v878, 8.507059e+37
      %v880 = vand.u32 %v868, 2147483648
      %v881 = vor.u32 1.1754944e-38, %v880
      %v882 = vsel %vm879, %v881, %v877
      %v883 = vmul.f32 1.0, %v882
      %v884 = vmul.f32 %v863, %v736
      %v885 = vmul.f32 %v844, %v864
      %v886 = vadd.f32 %v884, %v885
      %v887 = vtanh.pop %v886
      %v888 = vmul.f32 %v883, %v887
      %889 = vst [vmem:[#allocation2] sm:$0xff] %v888
      %890 = vst [vmem:[#allocation3] sm:$0xff] %v886
      %v891 = vld [vmem:[#allocation4] sm:$0xff]
      %v892 = vmax.f32 %v891, %v888
      %893 = vst [vmem:[#allocation4] sm:$0xff] %v892
      %p894 = scmp.eq.s32.totalorder %s15, 1
      // Predicated region
      $region41: #{seq2seq_forward.1} parent=35 // pred_check
        %p895 = pneg %p894
      $region42: #{seq2seq_forward.1} parent=35 // pred_check_branch
        %897 = sbr.rel (%p895) target = $region44
      $region43: #{seq2seq_forward.1} parent=35 // pred_region
        %v898 = vld [vmem:[#allocation4] sm:$0xff]
        %v899 = vld [vmem:[%s2] sm:$0xff]
        %v900 = vld [vmem:[%s2 + $0x8] sm:$0xff]
        %v901 = vld [vmem:[%s2 + $0x10] sm:$0xff]
        %v902 = vld [vmem:[%s2 + $0x18] sm:$0xff]
        %v903 = vld [vmem:[%s2 + $0x20] sm:$0xff]
        %v904 = vld [vmem:[%s2 + $0x28] sm:$0xff]
        %v905 = vld [vmem:[%s2 + $0x30] sm:$0xff]
        %v906 = vld [vmem:[%s2 + $0x38] sm:$0xff]
        %v907 = vld [vmem:[%s2 + $0x40] sm:$0xff]
        %v908 = vld [vmem:[%s2 + $0x48] sm:$0xff]
        %v909 = vld [vmem:[%s2 + $0x50] sm:$0xff]
        %v910 = vld [vmem:[%s2 + $0x58] sm:$0xff]
        %v911 = vld [vmem:[%s2 + $0x60] sm:$0xff]
        %v912 = vld [vmem:[%s2 + $0x68] sm:$0xff]
        %v913 = vld [vmem:[%s2 + $0x70] sm:$0xff]
        %v914 = vld [vmem:[%s2 + $0x78] sm:$0xff]
        %v915 = vld [vmem:[%s3] sm:$0x1]
        %v917 = vperm.slane %v915, 0
        %919 = vmatpush.msra.mxu0 %v914
        %920 = vmatpush.msra.mxu0 %v913
        %921 = vmatpush.msra.mxu0 %v912
        %922 = vmatpush.msra.mxu0 %v911
        %923 = vmatpush.msra.mxu0 %v910
        %924 = vmatpush.msra.mxu0 %v909
        %925 = vmatpush.msra.mxu0 %v908
        %926 = vmatpush.msra.mxu0 %v907
        %927 = vmatpush.msra.mxu0 %v906
        %928 = vmatpush.msra.mxu0 %v905
        %929 = vmatpush.msra.mxu0 %v904
        %930 = vmatpush.msra.mxu0 %v903
        %931 = vmatpush.msra.mxu0 %v902
        %932 = vmatpush.msra.mxu0 %v901
        %933 = vmatpush.msra.mxu0 %v900
        %934 = vmatpush.msra.mxu0 %v899
        %935 = vmatmul.f32.gmra.mxu0 %v898
        %v936 = vpop.f32.mrf.mxu0
        %v937 = vadd.f32 %v917, %v936
        %938 = vdwg.mxu0
        %939 = vst [vmem:[%s4] sm:$0xff] %v937
      $region44: #{seq2seq_forward.1} parent=35 // pred_fallthru
        _
      // Predicated region
      $region45: #{seq2seq_forward.1} parent=35 // pred_check
        %p940 = pneg %p117
      $region46: #{seq2seq_forward.1} parent=35 // pred_check_branch
        %942 = sbr.rel (%p940) target = $region48
      $region47: #{seq2seq_forward.1} parent=35 // pred_region
        _
      $region48: #{seq2seq_forward.1} parent=35 // pred_fallthru
        _
      // Predicated region
      $region49: #{seq2seq_forward.1} parent=35 // pred_check
        %p943 = pneg %p117
      $region50: #{seq2seq_forward.1} parent=35 // pred_check_branch
        %945 = sbr.rel (%p943) target = $region52
      $region51: #{seq2seq_forward.1} parent=35 // pred_region
        _
      $region52: #{seq2seq_forward.1} parent=35 // pred_fallthru
        _
    $region36: #{seq2seq_forward.1} parent=5 // pred_fallthru
      _
    %p946 = scmp.le.s32.totalorder 2, %s10
    // Predicated region
    $region53: #{seq2seq_forward.1} parent=5 // pred_check
      %p947 = pneg %p946
    $region54: #{seq2seq_forward.1} parent=5 // pred_check_branch
      %949 = sbr.rel (%p947) target = $region56
    $region55: #{seq2seq_forward.1} parent=5 // pred_region
      %s950 = ssub.s32 %s10, 2
    $region56: #{seq2seq_forward.1} parent=5 // pred_fallthru
      _
  $region6: #{seq2seq_forward.1} parent=0 // loop_footer
    %s14 = sadd.s32 1, %s10
  $region7: #{seq2seq_forward.1} parent=0 // loop_footer_branch
    %9 = sbr.rel target = $region3
  $region8: #{seq2seq_forward.1} parent=0 // loop_exit
    _

</llo_original>
